<compile_context>
chip_gen: v7x
topology: tpu7x:2x2x1
jax: 0.10.0
libtpu: 0.0.40
codegen_flags: <defaults>
</compile_context>

<pallas_src>
import functools

import jax
import jax.numpy as jnp
import numpy as np
from jax.experimental import pallas as pl
from jax.experimental.pallas import tpu as pltpu


# ----------------------------------------------------------------------------
# Fused Pallas kernel: Nb batch elements per grid step.
# ----------------------------------------------------------------------------
def _alignment_kernel(q_ref, c_ref, m_ref, w_ref, b_ref, out_ref, *,
                      smooth, eps, skip_softmax_max):
    # bf16 tiles in VMEM; lift to f32 for the elementwise / reduction math.
    q = q_ref[...].astype(jnp.float32)            # (Nb, Lq, D)
    mat = m_ref[...].astype(jnp.float32)          # (Nb, Lq, D)
    c_bf = c_ref[...]                             # (Nb, Ls, D) bf16 (MXU operand)

    # qm in f32 (VPU), cast once to bf16 as MXU operand.
    qm = (q * mat).astype(jnp.bfloat16)

    # a[b, l, s] = sum_d qm[b, l, d] * c[b, s, d]  == attn[b, s, l] of the torch
    # code; we keep the (Lq, Ls) layout throughout and never transpose.
    a = jax.lax.dot_general(
        qm, c_bf,
        dimension_numbers=(((2,), (2,)), ((0,), (0,))),
        preferred_element_type=jnp.float32)       # (Nb, Lq, Ls)

    # LeakyReLU(0.1)
    a = jnp.where(a >= 0, a, 0.1 * a)

    # torch: l2norm(attn, dim=-1) with attn shaped (Ls, Lq) -> normalize over
    # the Lq axis, which in our (Nb, Lq, Ls) layout is axis 1 (per batch elem).
    col_norm = jnp.sqrt(jnp.sum(a * a, axis=1, keepdims=True)) + eps
    a = a * pl.reciprocal(col_norm, approx=True)

    # torch: softmax(attn^T * smooth, dim=2) -> softmax over Ls (last dim).
    logits = a * smooth
    if not skip_softmax_max:
        logits = logits - jnp.max(logits, axis=-1, keepdims=True)
    p = jnp.exp(logits)
    p = p * pl.reciprocal(jnp.sum(p, axis=-1, keepdims=True), approx=True)

    # wcontext = p @ context  -> (Nb, Lq, D), then L2-normalize over D.
    wctx = jax.lax.dot_general(
        p.astype(jnp.bfloat16), c_bf,
        dimension_numbers=(((2,), (1,)), ((0,), (0,))),
        preferred_element_type=jnp.float32)       # (Nb, Lq, D)
    wnorm = jnp.sqrt(jnp.sum(wctx * wctx, axis=-1, keepdims=True)) + eps
    wctx = wctx * pl.reciprocal(wnorm, approx=True)

    # sim_rep = l2norm(Linear((query - wcontext)^2)).
    # Flatten (Nb, Lq) -> one big MXU M-dim instead of Nb tiny matmuls.
    diff = q - wctx
    sq = (diff * diff).astype(jnp.bfloat16)
    nb, lq, d = sq.shape
    sim = jnp.dot(sq.reshape(nb * lq, d), w_ref[...],
                  preferred_element_type=jnp.float32)      # (Nb*Lq, S)
    sim = sim.reshape(nb, lq, -1) + b_ref[...]             # (Nb, Lq, S)
    snorm = jnp.sqrt(jnp.sum(sim * sim, axis=-1, keepdims=True)) + eps
    out_ref[...] = (sim * pl.reciprocal(snorm, approx=True)).astype(out_ref.dtype)


# ----------------------------------------------------------------------------
# Wrapper
# ----------------------------------------------------------------------------
def _pick_block_n(n, lq, ls, d, s, vmem_budget_bytes=24 << 20):
    """Pick a batch tile that fits a conservative VMEM budget (safe for v7x's
    64 MiB) while keeping at least 2 grid steps (megacore on v7x)."""
    per_elem = (
        2 * 2 * (2 * lq * d + ls * d)        # bf16 inputs, double buffered
        + 2 * 4 * (lq * s)                   # f32 output, double buffered
        + 4 * (3 * lq * d + 2 * lq * ls + lq * s)   # f32 intermediates
    )
    nb = max(1, vmem_budget_bytes // max(per_elem, 1))
    if n >= 2:
        nb = min(nb, pl.cdiv(n, 2))          # keep grid length >= 2
    return int(max(1, min(nb, n)))


def alignment_vector_forward(query, context, matrix, w_t, b, *, smooth,
                             eps=1e-8, block_n=None):
    """query/matrix: (N, Lq, D); context: (N, Ls, D); w_t: (D, S); b: (1, S)."""
    N, Lq, D = query.shape
    _, Ls, _ = context.shape
    S = w_t.shape[1]

    if block_n is None:
        block_n = _pick_block_n(N, Lq, Ls, D, S)
    nsteps = pl.cdiv(N, block_n)
    n_pad = nsteps * block_n

    # bf16 operands for the MXU matmuls (f32 accumulation inside the kernel).
    q_bf = query.astype(jnp.bfloat16)
    c_bf = context.astype(jnp.bfloat16)
    m_bf = matrix.astype(jnp.bfloat16)
    w_bf = w_t.astype(jnp.bfloat16)
    b_f32 = b.astype(jnp.float32)

    if n_pad != N:
        pad = ((0, n_pad - N), (0, 0), (0, 0))
        q_bf = jnp.pad(q_bf, pad)
        c_bf = jnp.pad(c_bf, pad)
        m_bf = jnp.pad(m_bf, pad)

    # Safe to drop the softmax max-subtraction only when |smooth| is moderate
    # (post-l2norm scores are bounded by 1 in magnitude).
    skip_softmax_max = abs(float(smooth)) <= 80.0

    kernel = functools.partial(_alignment_kernel, smooth=float(smooth),
                               eps=float(eps),
                               skip_softmax_max=skip_softmax_max)
    out = pl.pallas_call(
        kernel,
        out_shape=jax.ShapeDtypeStruct((n_pad, Lq, S), jnp.float32),
        grid_spec=pltpu.PrefetchScalarGridSpec(
            num_scalar_prefetch=0,
            grid=(nsteps,),
            in_specs=[
                pl.BlockSpec((block_n, Lq, D), lambda n: (n, 0, 0)),   # query
                pl.BlockSpec((block_n, Ls, D), lambda n: (n, 0, 0)),   # context
                pl.BlockSpec((block_n, Lq, D), lambda n: (n, 0, 0)),   # matrix
                pl.BlockSpec((D, S), lambda n: (0, 0)),                # W^T (resident)
                pl.BlockSpec((1, S), lambda n: (0, 0)),                # bias (resident)
            ],
            out_specs=pl.BlockSpec((block_n, Lq, S), lambda n: (n, 0, 0)),
        ),
        compiler_params=pltpu.CompilerParams(
            dimension_semantics=("parallel",),       # independent batch tiles
            vmem_limit_bytes=48 << 20,               # headroom on v7x (64 MiB)
        ),
    )(q_bf, c_bf, m_bf, w_bf, b_f32)

    return out[:N] if n_pad != N else out


# ----------------------------------------------------------------------------
# Pure-JAX reference (f32, for sanity checking)
# ----------------------------------------------------------------------------
def _l2norm_ref(x, eps=1e-8):
    return x / (jnp.sqrt(jnp.sum(x * x, axis=-1, keepdims=True)) + eps)


def alignment_vector_ref(query, context, matrix, w_t, b, *, smooth, eps=1e-8):
    qm = query * matrix
    attn = jnp.einsum("nsd,nld->nsl", context, qm)           # (N, Ls, Lq)
    attn = jnp.where(attn >= 0, attn, 0.1 * attn)
    attn = _l2norm_ref(attn, eps)
    attn = jnp.swapaxes(attn, 1, 2)                          # (N, Lq, Ls)
    attn = jax.nn.softmax(attn * smooth, axis=-1)
    wctx = jnp.einsum("nls,nsd->nld", attn, context)         # (N, Lq, D)
    wctx = _l2norm_ref(wctx, eps)
    sim = jnp.einsum("nld,ds->nls", (query - wctx) ** 2, w_t) + b
    return _l2norm_ref(sim, eps)


# ----------------------------------------------------------------------------
# Example
# ----------------------------------------------------------------------------
if __name__ == "__main__":
    N, Lq, Ls = 4, 8, 16
    embed_dim, sim_dim = 128, 128       # lane-dense last dims
    smooth = 4.0

    key = jax.random.PRNGKey(0)
    kq, kc, km, kw, kb = jax.random.split(key, 5)

    query = jax.random.normal(kq, (N, Lq, embed_dim), jnp.float32)
    context = jax.random.normal(kc, (N, Ls, embed_dim), jnp.float32)
    # matrix broadcasts elementwise against query; use the same shape as query.
    matrix = jax.random.uniform(km, (N, Lq, embed_dim), jnp.float32, 0.5, 1.5)

    # nn.Linear(embed_dim, sim_dim): store the weight transposed (D, S).
    stdv = 1.0 / np.sqrt(embed_dim)
    w_t = jax.random.uniform(kw, (embed_dim, sim_dim), jnp.float32, -stdv, stdv)
    b = jax.random.uniform(kb, (1, sim_dim), jnp.float32, -stdv, stdv)

    out = alignment_vector_forward(query, context, matrix, w_t, b,
                                   smooth=smooth, block_n=2)
    out = jax.block_until_ready(out)

    ref = alignment_vector_ref(query, context, matrix, w_t, b, smooth=smooth)
    ref = jax.block_until_ready(ref)

    assert out.shape == (N, Lq, sim_dim)
    assert bool(jnp.all(jnp.isfinite(out)))
    # bf16 matmul operands + approx reciprocals: compare loosely vs f32 ref.
    assert bool(jnp.allclose(out, ref, rtol=3e-2, atol=3e-2)), float(
        jnp.max(jnp.abs(out - ref)))
    print("KERNEL_OK")
</pallas_src>

<mosaic_0001>
module attributes {stable_mosaic.version = 11 : i64} {
  func.func @_alignment_kernel(%arg0: i32, %arg1: memref<2x8x128xbf16, #tpu.memory_space<vmem>>, %arg2: memref<2x16x128xbf16, #tpu.memory_space<vmem>>, %arg3: memref<2x8x128xbf16, #tpu.memory_space<vmem>>, %arg4: memref<128x128xbf16, #tpu.memory_space<vmem>>, %arg5: memref<1x128xf32, #tpu.memory_space<vmem>>, %arg6: memref<2x8x128xf32, #tpu.memory_space<vmem>>) attributes {dimension_semantics = [#tpu.dimension_semantics<parallel>], iteration_bounds = array<i64: 2>, scalar_prefetch = 0 : i64, scratch_operands = 0 : i64, tpu.core_type = #tpu.core_type<tc>, window_params = [{transform_indices = @transform_0, window_bounds = array<i64: 2, 8, 128>}, {transform_indices = @transform_1, window_bounds = array<i64: 2, 16, 128>}, {transform_indices = @transform_2, window_bounds = array<i64: 2, 8, 128>}, {pipeline_mode = #tpu.pipeline_mode<synchronous>, transform_indices = @transform_3, window_bounds = array<i64: 128, 128>}, {pipeline_mode = #tpu.pipeline_mode<synchronous>, transform_indices = @transform_4, window_bounds = array<i64: 1, 128>}, {transform_indices = @transform_5, window_bounds = array<i64: 2, 8, 128>}]} {
    %c0 = arith.constant 0 : index
    %c0_0 = arith.constant 0 : index
    %c0_1 = arith.constant 0 : index
    %0 = vector.load %arg1[%c0, %c0_0, %c0_1] : memref<2x8x128xbf16, #tpu.memory_space<vmem>>, vector<2x8x128xbf16>
    %1 = arith.extf %0 : vector<2x8x128xbf16> to vector<2x8x128xf32>
    %c0_2 = arith.constant 0 : index
    %c0_3 = arith.constant 0 : index
    %c0_4 = arith.constant 0 : index
    %2 = vector.load %arg3[%c0_2, %c0_3, %c0_4] : memref<2x8x128xbf16, #tpu.memory_space<vmem>>, vector<2x8x128xbf16>
    %3 = arith.extf %2 : vector<2x8x128xbf16> to vector<2x8x128xf32>
    %c0_5 = arith.constant 0 : index
    %c0_6 = arith.constant 0 : index
    %c0_7 = arith.constant 0 : index
    %4 = vector.load %arg2[%c0_5, %c0_6, %c0_7] : memref<2x16x128xbf16, #tpu.memory_space<vmem>>, vector<2x16x128xbf16>
    %5 = arith.mulf %1, %3 : vector<2x8x128xf32>
    %6 = arith.truncf %5 : vector<2x8x128xf32> to vector<2x8x128xbf16>
    %cst = arith.constant dense<0.000000e+00> : vector<2x8x16xf32>
    %7 = tpu.matmul %6, %4, %cst {dimension_numbers = #tpu.dot_dimension_numbers<[2], [2], [1], [1], [0, 0, 0, 1, 1, 1], [0], [0]>} : vector<2x8x128xbf16>, vector<2x16x128xbf16>, vector<2x8x16xf32> -> vector<2x8x16xf32>
    %cst_8 = arith.constant 0.000000e+00 : f32
    %8 = vector.broadcast %cst_8 : f32 to vector<2x8x16xf32>
    %9 = arith.cmpf oge, %7, %8 : vector<2x8x16xf32>
    %cst_9 = arith.constant 1.000000e-01 : f32
    %10 = vector.broadcast %cst_9 : f32 to vector<2x8x16xf32>
    %11 = arith.mulf %10, %7 : vector<2x8x16xf32>
    %12 = arith.select %9, %7, %11 : vector<2x8x16xi1>, vector<2x8x16xf32>
    %13 = arith.mulf %12, %12 : vector<2x8x16xf32>
    %cst_10 = arith.constant dense<0.000000e+00> : vector<2x16xf32>
    %14 = vector.multi_reduction <add>, %13, %cst_10 [1] : vector<2x8x16xf32> to vector<2x16xf32>
    %15 = vector.shape_cast %14 : vector<2x16xf32> to vector<2x1x16xf32>
    %16 = math.sqrt %15 : vector<2x1x16xf32>
    %cst_11 = arith.constant 9.99999993E-9 : f32
    %17 = vector.broadcast %cst_11 : f32 to vector<2x1x16xf32>
    %18 = arith.addf %16, %17 : vector<2x1x16xf32>
    %19 = tpu.reciprocal %18 {approx = true} : vector<2x1x16xf32> -> vector<2x1x16xf32>
    %20 = vector.broadcast %19 : vector<2x1x16xf32> to vector<2x8x16xf32>
    %21 = arith.mulf %12, %20 : vector<2x8x16xf32>
    %cst_12 = arith.constant 4.000000e+00 : f32
    %22 = vector.broadcast %cst_12 : f32 to vector<2x8x16xf32>
    %23 = arith.mulf %21, %22 : vector<2x8x16xf32>
    %24 = math.exp %23 : vector<2x8x16xf32>
    %cst_13 = arith.constant dense<0.000000e+00> : vector<2x8xf32>
    %25 = vector.multi_reduction <add>, %24, %cst_13 [2] : vector<2x8x16xf32> to vector<2x8xf32>
    %26 = vector.shape_cast %25 : vector<2x8xf32> to vector<2x8x1xf32>
    %27 = tpu.reciprocal %26 {approx = true} : vector<2x8x1xf32> -> vector<2x8x1xf32>
    %28 = vector.broadcast %27 : vector<2x8x1xf32> to vector<2x8x16xf32>
    %29 = arith.mulf %24, %28 : vector<2x8x16xf32>
    %30 = arith.truncf %29 : vector<2x8x16xf32> to vector<2x8x16xbf16>
    %cst_14 = arith.constant dense<0.000000e+00> : vector<2x8x128xf32>
    %31 = tpu.matmul %30, %4, %cst_14 {dimension_numbers = #tpu.dot_dimension_numbers<[2], [1], [1], [2], [0, 0, 0, 1, 1, 2], [0], [0]>} : vector<2x8x16xbf16>, vector<2x16x128xbf16>, vector<2x8x128xf32> -> vector<2x8x128xf32>
    %32 = arith.mulf %31, %31 : vector<2x8x128xf32>
    %cst_15 = arith.constant dense<0.000000e+00> : vector<2x8xf32>
    %33 = vector.multi_reduction <add>, %32, %cst_15 [2] : vector<2x8x128xf32> to vector<2x8xf32>
    %34 = vector.shape_cast %33 : vector<2x8xf32> to vector<2x8x1xf32>
    %35 = math.sqrt %34 : vector<2x8x1xf32>
    %cst_16 = arith.constant 9.99999993E-9 : f32
    %36 = vector.broadcast %cst_16 : f32 to vector<2x8x1xf32>
    %37 = arith.addf %35, %36 : vector<2x8x1xf32>
    %38 = tpu.reciprocal %37 {approx = true} : vector<2x8x1xf32> -> vector<2x8x1xf32>
    %39 = vector.broadcast %38 : vector<2x8x1xf32> to vector<2x8x128xf32>
    %40 = arith.mulf %31, %39 : vector<2x8x128xf32>
    %41 = arith.subf %1, %40 : vector<2x8x128xf32>
    %42 = arith.mulf %41, %41 : vector<2x8x128xf32>
    %43 = arith.truncf %42 : vector<2x8x128xf32> to vector<2x8x128xbf16>
    %44 = vector.shape_cast %43 : vector<2x8x128xbf16> to vector<16x128xbf16>
    %c0_17 = arith.constant 0 : index
    %c0_18 = arith.constant 0 : index
    %45 = vector.load %arg4[%c0_17, %c0_18] : memref<128x128xbf16, #tpu.memory_space<vmem>>, vector<128x128xbf16>
    %cst_19 = arith.constant dense<0.000000e+00> : vector<16x128xf32>
    %46 = tpu.matmul %44, %45, %cst_19 {dimension_numbers = #tpu.dot_dimension_numbers<[1], [0], [0], [1], [0, 0, 1, 1], [], []>} : vector<16x128xbf16>, vector<128x128xbf16>, vector<16x128xf32> -> vector<16x128xf32>
    %47 = vector.shape_cast %46 : vector<16x128xf32> to vector<2x8x128xf32>
    %c0_20 = arith.constant 0 : index
    %c0_21 = arith.constant 0 : index
    %48 = vector.load %arg5[%c0_20, %c0_21] : memref<1x128xf32, #tpu.memory_space<vmem>>, vector<1x128xf32>
    %49 = vector.shape_cast %48 : vector<1x128xf32> to vector<1x1x128xf32>
    %50 = vector.broadcast %49 : vector<1x1x128xf32> to vector<2x8x128xf32>
    %51 = arith.addf %47, %50 : vector<2x8x128xf32>
    %52 = arith.mulf %51, %51 : vector<2x8x128xf32>
    %cst_22 = arith.constant dense<0.000000e+00> : vector<2x8xf32>
    %53 = vector.multi_reduction <add>, %52, %cst_22 [2] : vector<2x8x128xf32> to vector<2x8xf32>
    %54 = vector.shape_cast %53 : vector<2x8xf32> to vector<2x8x1xf32>
    %55 = math.sqrt %54 : vector<2x8x1xf32>
    %cst_23 = arith.constant 9.99999993E-9 : f32
    %56 = vector.broadcast %cst_23 : f32 to vector<2x8x1xf32>
    %57 = arith.addf %55, %56 : vector<2x8x1xf32>
    %58 = tpu.reciprocal %57 {approx = true} : vector<2x8x1xf32> -> vector<2x8x1xf32>
    %59 = vector.broadcast %58 : vector<2x8x1xf32> to vector<2x8x128xf32>
    %60 = arith.mulf %51, %59 : vector<2x8x128xf32>
    %c0_24 = arith.constant 0 : index
    %c0_25 = arith.constant 0 : index
    %c0_26 = arith.constant 0 : index
    %61 = vector.load %arg6[%c0_24, %c0_25, %c0_26] : memref<2x8x128xf32, #tpu.memory_space<vmem>>, vector<2x8x128xf32>
    tpu.vector_store %arg6[%c0_24, %c0_25, %c0_26], %60 {strides = array<i32>} : memref<2x8x128xf32, #tpu.memory_space<vmem>>, vector<2x8x128xf32>,
    return
  }
  func.func @transform_0(%arg0: i32) -> (i32, i32, i32) {
    %c0_i32 = arith.constant 0 : i32
    %c0_i32_0 = arith.constant 0 : i32
    %c0_i32_1 = arith.constant 0 : i32
    return %arg0, %c0_i32, %c0_i32_0 : i32, i32, i32
  }
  func.func @transform_1(%arg0: i32) -> (i32, i32, i32) {
    %c0_i32 = arith.constant 0 : i32
    %c0_i32_0 = arith.constant 0 : i32
    %c0_i32_1 = arith.constant 0 : i32
    return %arg0, %c0_i32, %c0_i32_0 : i32, i32, i32
  }
  func.func @transform_2(%arg0: i32) -> (i32, i32, i32) {
    %c0_i32 = arith.constant 0 : i32
    %c0_i32_0 = arith.constant 0 : i32
    %c0_i32_1 = arith.constant 0 : i32
    return %arg0, %c0_i32, %c0_i32_0 : i32, i32, i32
  }
  func.func @transform_3(%arg0: i32) -> (i32, i32) {
    %c0_i32 = arith.constant 0 : i32
    %c0_i32_0 = arith.constant 0 : i32
    %c0_i32_1 = arith.constant 0 : i32
    return %c0_i32, %c0_i32_0 : i32, i32
  }
  func.func @transform_4(%arg0: i32) -> (i32, i32) {
    %c0_i32 = arith.constant 0 : i32
    %c0_i32_0 = arith.constant 0 : i32
    %c0_i32_1 = arith.constant 0 : i32
    return %c0_i32, %c0_i32_0 : i32, i32
  }
  func.func @transform_5(%arg0: i32) -> (i32, i32, i32) {
    %c0_i32 = arith.constant 0 : i32
    %c0_i32_0 = arith.constant 0 : i32
    %c0_i32_1 = arith.constant 0 : i32
    return %arg0, %c0_i32, %c0_i32_0 : i32, i32, i32
  }
}

</mosaic_0001>

<llo_original>
// kernel: tpu_custom_call.1
$region0: #{tpu_custom_call.1}
  #allocation0 [shape = 'u32[]', space=smem, size = 0x4, offset = 0x4, fixed_abs, tag = 'smem constant byte address 0x4 - core index']
  #allocation1 [shape = 'u32[144,128]{1,0:T(1,128)}', space=vmem, size = 0x12000, scoped, tag = 'internal scratch']
  %s0 = inlined_call_operand.hbm [shape: bf16[4,8,128], index: 0, kind: input, shape index: {}]
  %s1 = inlined_call_operand.hbm [shape: bf16[4,16,128], index: 1, kind: input, shape index: {}]
  %s2 = inlined_call_operand.hbm [shape: bf16[4,8,128], index: 2, kind: input, shape index: {}]
  %s3 = inlined_call_operand.hbm [shape: bf16[128,128], index: 3, kind: input, shape index: {}]
  %s4 = inlined_call_operand.vmem [shape: f32[1,128], index: 4, kind: input, shape index: {}]
  %s5 = inlined_call_operand.hbm [shape: f32[4,8,128], index: 5, kind: output, shape index: {}]
  %s6 = sld [smem:[#allocation0]]
  $region69: #{tpu_custom_call.1} parent=0
    _
  %s8 = ssub.s32 1, %s6
  %s9 = scalar_select 0, %s8, %s6
  $region1: #{tpu_custom_call.1} parent=0
    #allocation2 [shape = 'u8[8192]{0}', space=vmem, size = 0x2000, scoped, tag = 'input window, operand 0']
    #allocation3 [shape = 's32[2]{0}', space=sflag, size = 0x8, scoped, tag = 'scoped memory for tpu_custom_call.1']
    #allocation4 [shape = 's32[2]{0}', space=sflag, size = 0x8, scoped, tag = 'scoped memory for tpu_custom_call.1']
    #allocation5 [shape = 'u8[16384]{0}', space=vmem, size = 0x4000, scoped, tag = 'input window, operand 1']
    #allocation6 [shape = 's32[2]{0}', space=sflag, size = 0x8, scoped, tag = 'scoped memory for tpu_custom_call.1']
    #allocation7 [shape = 'u8[8192]{0}', space=vmem, size = 0x2000, scoped, tag = 'input window, operand 2']
    #allocation8 [shape = 'u8[32768]{0}', space=vmem, size = 0x8000, scoped, tag = 'input window, operand 3, single buffered']
    #allocation9 [shape = 's32[1]{0}', space=sflag, size = 0x4, scoped, tag = 'scoped memory for tpu_custom_call.1']
    #allocation10 [shape = 'u8[16384]{0}', space=vmem, size = 0x4000, scoped, tag = 'output window, operand 0']
    %10 = vsyncpa [#allocation3], 0
    %s11 = scalar_lea.sflag [#allocation3], 1
    %12 = vsyncpa %s11, 0
    %13 = vsyncpa [#allocation6], 0
    %s14 = scalar_lea.sflag [#allocation6], 1
    %15 = vsyncpa %s14, 0
    %16 = vsyncpa [#allocation9], 0
    %17 = vsyncpa [#allocation4], 0
    %s18 = scalar_lea.sflag [#allocation4], 1
    %19 = vsyncpa %s18, 0
    loop: start=0, step=1, limit=4
    $region2: #{tpu_custom_call.1} parent=1 // loop_pre_header
      _
    $region3: #{tpu_custom_call.1} parent=1 // loop_header
      %s21 = sphi 0, %s25
      %p22 = scmp.ge.s32.totalorder %s21, 4
      %s31 = sphi 0, %s33
      %s34 = sphi 0, %s31
      %s35 = sphi 0, %s34
      %s51 = sphi 0, %s35
      %s57 = sphi 0, %s59
      %s60 = sphi 0, %s57
      %s61 = sphi 0, %s60
      %s77 = sphi 0, %s61
      %s83 = sphi 0, %s85
      %s86 = sphi 0, %s83
      %s87 = sphi 0, %s86
      %s103 = sphi 0, %s87
      %s107 = sphi 0, %s107
      %s109 = sphi 0, %s107
      %s110 = sphi 0, %s109
      %s124 = sphi 0, %s110
      %s128 = sphi 0, %s128
      %s130 = sphi 0, %s128
      %s131 = sphi 0, %s130
      %s145 = sphi 0, %s131
      %s151 = sphi 0, %s153
      %s154 = sphi 0, %s151
      %s155 = sphi 0, %s154
      %s171 = sphi 0, %s155
    $region4: #{tpu_custom_call.1} parent=1 // loop_header_branch
      %24 = sbr.rel (%p22) target = $region8
    $region5: #{tpu_custom_call.1} parent=1 // loop_body
      %s26 = ssub.s32 %s21, 1
      %s27 = ssub.s32 %s21, 2
      %s28 = sadd.s32 %s21, 1
      %s29 = ssub.s32 %s21, %s28
      %p30 = scmp.eq.s32.totalorder %s29, 0
      %s32 = sadd.s32 %s31, 1
      %s33 = scalar_select %p30, %s31, %s32
      %p36 = pneg %p30
      %p37 = scmp.eq.s32.totalorder %s21, 1
      %p38 = por %p36, %p37
      %p39 = scmp.ne.s32.totalorder %s31, %s34
      %p40 = scmp.eq.s32.totalorder %s21, 0
      %p41 = por %p39, %p40
      %p42 = scmp.ne.s32.totalorder %s31, %s34
      %p43 = scmp.eq.s32.totalorder %s26, 1
      %p44 = por %p42, %p43
      %p45 = scmp.ne.s32.totalorder %s34, %s35
      %p46 = scmp.eq.s32.totalorder %s26, 0
      %p47 = por %p45, %p46
      %p48 = scmp.ne.s32.totalorder %s34, %s35
      %p49 = scmp.eq.s32.totalorder %s27, 1
      %p50 = por %p48, %p49
      %p52 = scmp.ne.s32.totalorder %s35, %s51
      %p53 = scmp.eq.s32.totalorder %s27, 0
      %p54 = por %p52, %p53
      %s55 = ssub.s32 %s21, %s28
      %p56 = scmp.eq.s32.totalorder %s55, 0
      %s58 = sadd.s32 %s57, 1
      %s59 = scalar_select %p56, %s57, %s58
      %p62 = pneg %p56
      %p63 = scmp.eq.s32.totalorder %s21, 1
      %p64 = por %p62, %p63
      %p65 = scmp.ne.s32.totalorder %s57, %s60
      %p66 = scmp.eq.s32.totalorder %s21, 0
      %p67 = por %p65, %p66
      %p68 = scmp.ne.s32.totalorder %s57, %s60
      %p69 = scmp.eq.s32.totalorder %s26, 1
      %p70 = por %p68, %p69
      %p71 = scmp.ne.s32.totalorder %s60, %s61
      %p72 = scmp.eq.s32.totalorder %s26, 0
      %p73 = por %p71, %p72
      %p74 = scmp.ne.s32.totalorder %s60, %s61
      %p75 = scmp.eq.s32.totalorder %s27, 1
      %p76 = por %p74, %p75
      %p78 = scmp.ne.s32.totalorder %s61, %s77
      %p79 = scmp.eq.s32.totalorder %s27, 0
      %p80 = por %p78, %p79
      %s81 = ssub.s32 %s21, %s28
      %p82 = scmp.eq.s32.totalorder %s81, 0
      %s84 = sadd.s32 %s83, 1
      %s85 = scalar_select %p82, %s83, %s84
      %p88 = pneg %p82
      %p89 = scmp.eq.s32.totalorder %s21, 1
      %p90 = por %p88, %p89
      %p91 = scmp.ne.s32.totalorder %s83, %s86
      %p92 = scmp.eq.s32.totalorder %s21, 0
      %p93 = por %p91, %p92
      %p94 = scmp.ne.s32.totalorder %s83, %s86
      %p95 = scmp.eq.s32.totalorder %s26, 1
      %p96 = por %p94, %p95
      %p97 = scmp.ne.s32.totalorder %s86, %s87
      %p98 = scmp.eq.s32.totalorder %s26, 0
      %p99 = por %p97, %p98
      %p100 = scmp.ne.s32.totalorder %s86, %s87
      %p101 = scmp.eq.s32.totalorder %s27, 1
      %p102 = por %p100, %p101
      %p104 = scmp.ne.s32.totalorder %s87, %s103
      %p105 = scmp.eq.s32.totalorder %s27, 0
      %p106 = por %p104, %p105
      %s108 = sadd.s32 %s107, 1
      %p111 = scmp.eq.s32.totalorder %s21, 1
      %p112 = scmp.ne.s32.totalorder %s107, %s109
      %p113 = scmp.eq.s32.totalorder %s21, 0
      %p114 = por %p112, %p113
      %p115 = scmp.ne.s32.totalorder %s107, %s109
      %p116 = scmp.eq.s32.totalorder %s26, 1
      %p117 = por %p115, %p116
      %p118 = scmp.ne.s32.totalorder %s109, %s110
      %p119 = scmp.eq.s32.totalorder %s26, 0
      %p120 = por %p118, %p119
      %p121 = scmp.ne.s32.totalorder %s109, %s110
      %p122 = scmp.eq.s32.totalorder %s27, 1
      %p123 = por %p121, %p122
      %p125 = scmp.ne.s32.totalorder %s110, %s124
      %p126 = scmp.eq.s32.totalorder %s27, 0
      %p127 = por %p125, %p126
      %s129 = sadd.s32 %s128, 1
      %p132 = scmp.eq.s32.totalorder %s21, 1
      %p133 = scmp.ne.s32.totalorder %s128, %s130
      %p134 = scmp.eq.s32.totalorder %s21, 0
      %p135 = por %p133, %p134
      %p136 = scmp.ne.s32.totalorder %s128, %s130
      %p137 = scmp.eq.s32.totalorder %s26, 1
      %p138 = por %p136, %p137
      %p139 = scmp.ne.s32.totalorder %s130, %s131
      %p140 = scmp.eq.s32.totalorder %s26, 0
      %p141 = por %p139, %p140
      %p142 = scmp.ne.s32.totalorder %s130, %s131
      %p143 = scmp.eq.s32.totalorder %s27, 1
      %p144 = por %p142, %p143
      %p146 = scmp.ne.s32.totalorder %s131, %s145
      %p147 = scmp.eq.s32.totalorder %s27, 0
      %p148 = por %p146, %p147
      %s149 = ssub.s32 %s21, %s28
      %p150 = scmp.eq.s32.totalorder %s149, 0
      %s152 = sadd.s32 %s151, 1
      %s153 = scalar_select %p150, %s151, %s152
      %p156 = pneg %p150
      %p157 = scmp.eq.s32.totalorder %s21, 1
      %p158 = por %p156, %p157
      %p159 = scmp.ne.s32.totalorder %s151, %s154
      %p160 = scmp.eq.s32.totalorder %s21, 0
      %p161 = por %p159, %p160
      %p162 = scmp.ne.s32.totalorder %s151, %s154
      %p163 = scmp.eq.s32.totalorder %s26, 1
      %p164 = por %p162, %p163
      %p165 = scmp.ne.s32.totalorder %s154, %s155
      %p166 = scmp.eq.s32.totalorder %s26, 0
      %p167 = por %p165, %p166
      %p168 = scmp.ne.s32.totalorder %s154, %s155
      %p169 = scmp.eq.s32.totalorder %s27, 1
      %p170 = por %p168, %p169
      %p172 = scmp.ne.s32.totalorder %s155, %s171
      %p173 = scmp.eq.s32.totalorder %s27, 0
      %p174 = por %p172, %p173
      %p175 = scmp.le.s32.totalorder 1, %s21
      %p176 = scmp.lt.s32.totalorder %s21, 3
      %p177 = pnand %p175, %p176
      %p178 = pneg %p177
      // Predicated region
      $region9: #{tpu_custom_call.1} parent=5 // pred_check
        _
      $region10: #{tpu_custom_call.1} parent=5 // pred_check_branch
        %180 = sbr.rel (%p177) target = $region12
      $region11: #{tpu_custom_call.1} parent=5 // pred_region
        %s181 = ssub.s32 %s21, 1
        // Predicated region
        $region13: #{tpu_custom_call.1} parent=11 // pred_check
          %p182 = pneg %p120
        $region14: #{tpu_custom_call.1} parent=11 // pred_check_branch
          %184 = sbr.rel (%p182) target = $region16
        $region15: #{tpu_custom_call.1} parent=11 // pred_region
          %s186 = ssub.s32 1024, 1024
          %187 = vsyncadd [#allocation9], %s186
          %s188 = sshll.u32 [#allocation8], 4
          %s189 = int_to_ptr.vmem [resolvable:$true] %s188
          %194 = dma.hbm_to_vmem [thread:$0]  %s3, 1024, %s189, [#allocation9], 64, 64, 4
        $region16: #{tpu_custom_call.1} parent=11 // pred_fallthru
          _
        // Predicated region
        $region17: #{tpu_custom_call.1} parent=11 // pred_check
          %p195 = pneg %p141
        $region18: #{tpu_custom_call.1} parent=11 // pred_check_branch
          %197 = sbr.rel (%p195) target = $region20
        $region19: #{tpu_custom_call.1} parent=11 // pred_region
          _
        $region20: #{tpu_custom_call.1} parent=11 // pred_fallthru
          _
      $region12: #{tpu_custom_call.1} parent=5 // pred_fallthru
        _
      %p198 = scmp.lt.s32.totalorder %s21, 2
      // Predicated region
      $region21: #{tpu_custom_call.1} parent=5 // pred_check
        %p199 = pneg %p198
      $region22: #{tpu_custom_call.1} parent=5 // pred_check_branch
        %201 = sbr.rel (%p199) target = $region24
      $region23: #{tpu_custom_call.1} parent=5 // pred_region
        // Predicated region
        $region25: #{tpu_custom_call.1} parent=23 // pred_check
          %p202 = pneg %p41
        $region26: #{tpu_custom_call.1} parent=23 // pred_check_branch
          %204 = sbr.rel (%p202) target = $region28
        $region27: #{tpu_custom_call.1} parent=23 // pred_region
          %s205 = sand.u32 %s31, 1
          %s206 = scalar_lea.sflag [#allocation3], %s205
          %s207 = sand.u32 %s31, 1
          %s208 = smul.addr %s207, 8
          %s209 = scalar_lea.vmem [#allocation2], %s208
          %s210 = smul.u32 2, %s21
          %s212 = ssub.s32 128, 128
          %213 = vsyncadd %s206, %s212
          %s214 = smul.addr %s210, 64
          %s215 = scalar_lea.hbm %s0, %s214
          %s216 = sshll.u32 %s209, 4
          %s217 = int_to_ptr.vmem [resolvable:$true] %s216
          %222 = dma.hbm_to_vmem [thread:$0]  %s215, 128, %s217, %s206, 64, 64, 4
        $region28: #{tpu_custom_call.1} parent=23 // pred_fallthru
          _
        // Predicated region
        $region29: #{tpu_custom_call.1} parent=23 // pred_check
          %p223 = pneg %p67
        $region30: #{tpu_custom_call.1} parent=23 // pred_check_branch
          %225 = sbr.rel (%p223) target = $region32
        $region31: #{tpu_custom_call.1} parent=23 // pred_region
          %s226 = sand.u32 %s21, 1
          %s227 = scalar_lea.sflag [#allocation6], %s226
          %s228 = sand.u32 %s57, 1
          %s229 = smul.addr %s228, 16
          %s230 = scalar_lea.vmem [#allocation5], %s229
          %s231 = smul.u32 2, %s21
          %s233 = ssub.s32 256, 256
          %234 = vsyncadd %s227, %s233
          %s235 = smul.addr %s231, 2
          %s236 = smul.addr %s235, 64
          %s237 = scalar_lea.hbm %s1, %s236
          %s238 = sshll.u32 %s230, 4
          %s239 = int_to_ptr.vmem [resolvable:$true] %s238
          %244 = dma.hbm_to_vmem [thread:$0]  %s237, 256, %s239, %s227, 64, 64, 4
        $region32: #{tpu_custom_call.1} parent=23 // pred_fallthru
          _
        // Predicated region
        $region33: #{tpu_custom_call.1} parent=23 // pred_check
          %p245 = pneg %p93
        $region34: #{tpu_custom_call.1} parent=23 // pred_check_branch
          %247 = sbr.rel (%p245) target = $region36
        $region35: #{tpu_custom_call.1} parent=23 // pred_region
          %s248 = sand.u32 %s21, 1
          %s249 = scalar_lea.sflag [#allocation6], %s248
          %s250 = sand.u32 %s83, 1
          %s251 = smul.addr %s250, 8
          %s252 = scalar_lea.vmem [#allocation7], %s251
          %s253 = smul.u32 2, %s21
          %s255 = ssub.s32 128, 128
          %256 = vsyncadd %s249, %s255
          %s257 = smul.addr %s253, 64
          %s258 = scalar_lea.hbm %s2, %s257
          %s259 = sshll.u32 %s252, 4
          %s260 = int_to_ptr.vmem [resolvable:$true] %s259
          %265 = dma.hbm_to_vmem [thread:$0]  %s258, 128, %s260, %s249, 64, 64, 4
        $region36: #{tpu_custom_call.1} parent=23 // pred_fallthru
          _
      $region24: #{tpu_custom_call.1} parent=5 // pred_fallthru
        _
      %p266 = scmp.le.s32.totalorder 1, %s21
      %p267 = scmp.lt.s32.totalorder %s21, 3
      %p268 = pnand %p266, %p267
      %p269 = pneg %p268
      // Predicated region
      $region37: #{tpu_custom_call.1} parent=5 // pred_check
        _
      $region38: #{tpu_custom_call.1} parent=5 // pred_check_branch
        %271 = sbr.rel (%p268) target = $region40
      $region39: #{tpu_custom_call.1} parent=5 // pred_region
        %s272 = ssub.s32 %s21, 1
        %s273 = sand.u32 %s34, 1
        %s274 = scalar_lea.sflag [#allocation3], %s273
        %s275 = sand.u32 %s34, 1
        %s276 = smul.addr %s275, 8
        %s277 = scalar_lea.vmem [#allocation2], %s276
        // Predicated region
        $region41: #{tpu_custom_call.1} parent=39 // pred_check
          %p278 = pneg %p47
        $region42: #{tpu_custom_call.1} parent=39 // pred_check_branch
          %280 = sbr.rel (%p278) target = $region44
        $region43: #{tpu_custom_call.1} parent=39 // pred_region
          %281 = dma.done %s274, 128
        $region44: #{tpu_custom_call.1} parent=39 // pred_fallthru
          _
        %s282 = sand.u32 %s26, 1
        %s283 = scalar_lea.sflag [#allocation6], %s282
        %s284 = sand.u32 %s60, 1
        %s285 = smul.addr %s284, 16
        %s286 = scalar_lea.vmem [#allocation5], %s285
        // Predicated region
        $region45: #{tpu_custom_call.1} parent=39 // pred_check
          %p287 = pneg %p73
        $region46: #{tpu_custom_call.1} parent=39 // pred_check_branch
          %289 = sbr.rel (%p287) target = $region48
        $region47: #{tpu_custom_call.1} parent=39 // pred_region
          %290 = dma.done %s283, 256
        $region48: #{tpu_custom_call.1} parent=39 // pred_fallthru
          _
        %s291 = sand.u32 %s26, 1
        %s292 = scalar_lea.sflag [#allocation6], %s291
        %s293 = sand.u32 %s86, 1
        %s294 = smul.addr %s293, 8
        %s295 = scalar_lea.vmem [#allocation7], %s294
        // Predicated region
        $region49: #{tpu_custom_call.1} parent=39 // pred_check
          %p296 = pneg %p99
        $region50: #{tpu_custom_call.1} parent=39 // pred_check_branch
          %298 = sbr.rel (%p296) target = $region52
        $region51: #{tpu_custom_call.1} parent=39 // pred_region
          %299 = dma.done %s292, 128
        $region52: #{tpu_custom_call.1} parent=39 // pred_fallthru
          _
        // Predicated region
        $region53: #{tpu_custom_call.1} parent=39 // pred_check
          %p300 = pneg %p120
        $region54: #{tpu_custom_call.1} parent=39 // pred_check_branch
          %302 = sbr.rel (%p300) target = $region56
        $region55: #{tpu_custom_call.1} parent=39 // pred_region
          %303 = dma.done [#allocation9], 1024
        $region56: #{tpu_custom_call.1} parent=39 // pred_fallthru
          _
        %s304 = sand.u32 %s34, 1
        %s305 = scalar_lea.sflag [#allocation3], %s304
        %s306 = sand.u32 %s34, 1
        %s307 = smul.addr %s306, 8
        %s308 = scalar_lea.vmem [#allocation2], %s307
        %p309 = pneg %p47
        %p310 = pneg %p44
        %s311 = sand.u32 %s26, 1
        %s312 = scalar_lea.sflag [#allocation6], %s311
        %s313 = sand.u32 %s60, 1
        %s314 = smul.addr %s313, 16
        %s315 = scalar_lea.vmem [#allocation5], %s314
        %p316 = pneg %p73
        %p317 = pneg %p70
        %s318 = sand.u32 %s26, 1
        %s319 = scalar_lea.sflag [#allocation6], %s318
        %s320 = sand.u32 %s86, 1
        %s321 = smul.addr %s320, 8
        %s322 = scalar_lea.vmem [#allocation7], %s321
        %p323 = pneg %p99
        %p324 = pneg %p96
        %p325 = pneg %p120
        %p326 = pneg %p117
        %p327 = pneg %p141
        %p328 = pneg %p138
        %p329 = pneg %p167
        %p330 = pneg %p164
        %s331 = sand.u32 %s154, 1
        %s332 = scalar_lea.sflag [#allocation4], %s331
        %s333 = sand.u32 %s154, 1
        %s334 = smul.addr %s333, 16
        %s335 = scalar_lea.vmem [#allocation10], %s334
        %s336 = smul.u32 2, %s26
        %s337 = smul.u32 2, %s26
        %s338 = smul.u32 2, %s26
        %s339 = smul.u32 2, %s26
        %v341 = vld [vmem:[%s277] sm:$0xf]
        %v342 = vld [vmem:[%s277 + $0x4] sm:$0xf]
        %v343 = vunpack.c.l.bf16 %v341
        %v344 = vunpack.c.l.bf16 %v342
        %v345 = vld [vmem:[%s295] sm:$0xf]
        %v346 = vld [vmem:[%s295 + $0x4] sm:$0xf]
        %v347 = vunpack.c.l.bf16 %v345
        %v348 = vunpack.c.l.bf16 %v346
        %v349 = vld [vmem:[%s286] sm:$0xf]
        %v350 = vld [vmem:[%s286 + $0x4] sm:$0xf]
        %v351 = vld [vmem:[%s286 + $0x8] sm:$0xf]
        %v352 = vld [vmem:[%s286 + $0xc] sm:$0xf]
        %v353 = vmul.f32 %v343, %v347
        %v354 = vmul.f32 %v344, %v348
        %v355 = vpack.c.bf16 %v353, %v353
        %v356 = vpack.c.bf16 %v354, %v354
        %v359 = vunpack.c.l.b16 %v349
        %v360 = vunpack.c.l.b16 %v350
        %v361 = vpack.c.b16 %v360, %v359
        %363 = vmatprep.subr.bf16.mxu0 0
        %364 = vmatpush1.bf16.xpose.msra.mxu0 %v361
        %365 = vmatprep.subr.bf16.mxu0 0
        %366 = vmatpush1.bf16.xpose.msra.mxu0 0
        %367 = vmatprep.subr.bf16.mxu0 0
        %368 = vmatpush1.bf16.xpose.msra.mxu0 0
        %369 = vmatprep.subr.bf16.mxu0 0
        %370 = vmatpush1.bf16.xpose.msra.mxu0 0
        %371 = vmatprep.subr.bf16.mxu0 0
        %372 = vmatpush1.bf16.xpose.msra.mxu0 0
        %373 = vmatprep.subr.bf16.mxu0 0
        %374 = vmatpush1.bf16.xpose.msra.mxu0 0
        %375 = vmatprep.subr.bf16.mxu0 0
        %376 = vmatpush1.bf16.xpose.msra.mxu0 0
        %377 = vmatprep.subr.bf16.mxu0 0
        %378 = vmatpush1.bf16.xpose.msra.mxu0 0
        %379 = vmatprep.subr.bf16.mxu0 0
        %380 = vmatpush1.bf16.xpose.msra.mxu0 0
        %381 = vmatprep.subr.bf16.mxu0 0
        %382 = vmatpush1.bf16.xpose.msra.mxu0 0
        %383 = vmatprep.subr.bf16.mxu0 0
        %384 = vmatpush1.bf16.xpose.msra.mxu0 0
        %385 = vmatprep.subr.bf16.mxu0 0
        %386 = vmatpush1.bf16.xpose.msra.mxu0 0
        %387 = vmatprep.subr.bf16.mxu0 0
        %388 = vmatpush1.bf16.xpose.msra.mxu0 0
        %389 = vmatprep.subr.bf16.mxu0 0
        %390 = vmatpush1.bf16.xpose.msra.mxu0 0
        %391 = vmatprep.subr.bf16.mxu0 0
        %392 = vmatpush1.bf16.xpose.msra.mxu0 0
        %393 = vmatprep.subr.bf16.mxu0 0
        %394 = vmatpush1.bf16.xpose.msra.mxu0 0
        %395 = vmatprep.mubr.bf16.mxu0 0
        %396 = vmatmul.mubr.bf16.gmra.mrb[0].mxu0 %v355
        %v397 = vpop.f32.mrb[0].mxu0
        %v398 = vadd.f32 0.0, %v397
        %v399 = vpop.f32.mrb[0].mxu0
        %v400 = vpop.f32.mrb[0].mxu0
        %v401 = vpop.f32.mrb[0].mxu0
        %402 = vdwg.mxu0
        %v405 = vunpack.c.l.b16 %v351
        %v406 = vunpack.c.l.b16 %v352
        %v407 = vpack.c.b16 %v406, %v405
        %409 = vmatprep.subr.bf16.mxu0 0
        %410 = vmatpush1.bf16.xpose.msra.mxu0 %v407
        %411 = vmatprep.subr.bf16.mxu0 0
        %412 = vmatpush1.bf16.xpose.msra.mxu0 0
        %413 = vmatprep.subr.bf16.mxu0 0
        %414 = vmatpush1.bf16.xpose.msra.mxu0 0
        %415 = vmatprep.subr.bf16.mxu0 0
        %416 = vmatpush1.bf16.xpose.msra.mxu0 0
        %417 = vmatprep.subr.bf16.mxu0 0
        %418 = vmatpush1.bf16.xpose.msra.mxu0 0
        %419 = vmatprep.subr.bf16.mxu0 0
        %420 = vmatpush1.bf16.xpose.msra.mxu0 0
        %421 = vmatprep.subr.bf16.mxu0 0
        %422 = vmatpush1.bf16.xpose.msra.mxu0 0
        %423 = vmatprep.subr.bf16.mxu0 0
        %424 = vmatpush1.bf16.xpose.msra.mxu0 0
        %425 = vmatprep.subr.bf16.mxu0 0
        %426 = vmatpush1.bf16.xpose.msra.mxu0 0
        %427 = vmatprep.subr.bf16.mxu0 0
        %428 = vmatpush1.bf16.xpose.msra.mxu0 0
        %429 = vmatprep.subr.bf16.mxu0 0
        %430 = vmatpush1.bf16.xpose.msra.mxu0 0
        %431 = vmatprep.subr.bf16.mxu0 0
        %432 = vmatpush1.bf16.xpose.msra.mxu0 0
        %433 = vmatprep.subr.bf16.mxu0 0
        %434 = vmatpush1.bf16.xpose.msra.mxu0 0
        %435 = vmatprep.subr.bf16.mxu0 0
        %436 = vmatpush1.bf16.xpose.msra.mxu0 0
        %437 = vmatprep.subr.bf16.mxu0 0
        %438 = vmatpush1.bf16.xpose.msra.mxu0 0
        %439 = vmatprep.subr.bf16.mxu0 0
        %440 = vmatpush1.bf16.xpose.msra.mxu0 0
        %441 = vmatprep.mubr.bf16.mxu0 0
        %442 = vmatmul.mubr.bf16.gmra.mrb[0].mxu0 %v356
        %v443 = vpop.f32.mrb[0].mxu0
        %v444 = vadd.f32 0.0, %v443
        %v445 = vpop.f32.mrb[0].mxu0
        %v446 = vpop.f32.mrb[0].mxu0
        %v447 = vpop.f32.mrb[0].mxu0
        %448 = vdwg.mxu0
        %vm449 = vcmp.ge.f32.partialorder %v398, 0.0
        %vm450 = vcmp.ge.f32.partialorder %v444, 0.0
        %v451 = vmul.f32 %v398, 0.1
        %v452 = vmul.f32 %v444, 0.1
        %v453 = vsel %vm449, %v398, %v451
        %v454 = vsel %vm450, %v444, %v452
        %v455 = vmul.f32 %v453, %v453
        %v456 = vmul.f32 %v454, %v454
        %vm457 = vcmask 130048
        %v458 = vsel %vm457, %v455, 0.0
        %v459 = vrot.slane %v458, 4
        %v460 = vadd.f32 %v458, %v459
        %v461 = vrot.slane %v460, 2
        %v462 = vadd.f32 %v460, %v461
        %v463 = vrot.slane %v462, 1
        %v464 = vadd.f32 %v462, %v463
        %v465 = vsel %vm457, %v456, 0.0
        %v466 = vrot.slane %v465, 4
        %v467 = vadd.f32 %v465, %v466
        %v468 = vrot.slane %v467, 2
        %v469 = vadd.f32 %v467, %v468
        %v470 = vrot.slane %v469, 1
        %v471 = vadd.f32 %v469, %v470
        %v472 = vrsqrt.pop %v464
        %v473 = vmul.f32 %v464, %v472
        %vm474 = vcmp.eq.f32.partialorder %v464, inf
        %v475 = vsel %vm474, %v464, %v473
        %vm476 = vcmp.eq.f32.partialorder %v464, 0.0
        %v477 = vand.u32 %v464, 2147483648
        %v478 = vsel %vm476, %v477, %v475
        %v479 = vrsqrt.pop %v471
        %v480 = vmul.f32 %v471, %v479
        %vm481 = vcmp.eq.f32.partialorder %v471, inf
        %v482 = vsel %vm481, %v471, %v480
        %vm483 = vcmp.eq.f32.partialorder %v471, 0.0
        %v484 = vand.u32 %v471, 2147483648
        %v485 = vsel %vm483, %v484, %v482
        %v486 = vadd.f32 %v478, 1e-08
        %v487 = vadd.f32 %v485, 1e-08
        %v488 = vrcp.pop %v486
        %v489 = vrcp.pop %v487
        %v490 = vmul.f32 %v453, %v488
        %v491 = vmul.f32 %v454, %v489
        %v492 = vmul.f32 %v490, 4.0
        %v493 = vmul.f32 %v491, 4.0
        %v494 = vmul.f32 %v492, 1.442695
        %v495 = vpow.pop %v494
        %v496 = vmul.f32 %v493, 1.442695
        %v497 = vpow.pop %v496
        %v498 = vsel %vm457, %v495, 0.0
        %499 = vadd.xlane.f32.xlu0 %v498
        %v500 = vpop.xlane.xlu0 %499
        %v501 = vsel %vm457, %v497, 0.0
        %502 = vadd.xlane.f32.xlu0 %v501
        %v503 = vpop.xlane.xlu0 %502
        %v504 = vrcp.pop %v500
        %v505 = vrcp.pop %v503
        %v506 = vmul.f32 %v495, %v504
        %v507 = vmul.f32 %v497, %v505
        %v508 = vpack.c.bf16 %v506, %v506
        %v509 = vpack.c.bf16 %v507, %v507
        %v511 = vsel %vm457, %v508, 0
        %513 = vmatprep.subr.bf16.mxu0 0
        %514 = vmatpush1.bf16.msra.mxu0 %v361
        %515 = vmatprep.subr.bf16.mxu0 0
        %516 = vmatpush1.bf16.msra.mxu0 0
        %517 = vmatprep.subr.bf16.mxu0 0
        %518 = vmatpush1.bf16.msra.mxu0 0
        %519 = vmatprep.subr.bf16.mxu0 0
        %520 = vmatpush1.bf16.msra.mxu0 0
        %521 = vmatprep.subr.bf16.mxu0 0
        %522 = vmatpush1.bf16.msra.mxu0 0
        %523 = vmatprep.subr.bf16.mxu0 0
        %524 = vmatpush1.bf16.msra.mxu0 0
        %525 = vmatprep.subr.bf16.mxu0 0
        %526 = vmatpush1.bf16.msra.mxu0 0
        %527 = vmatprep.subr.bf16.mxu0 0
        %528 = vmatpush1.bf16.msra.mxu0 0
        %529 = vmatprep.subr.bf16.mxu0 0
        %530 = vmatpush1.bf16.msra.mxu0 0
        %531 = vmatprep.subr.bf16.mxu0 0
        %532 = vmatpush1.bf16.msra.mxu0 0
        %533 = vmatprep.subr.bf16.mxu0 0
        %534 = vmatpush1.bf16.msra.mxu0 0
        %535 = vmatprep.subr.bf16.mxu0 0
        %536 = vmatpush1.bf16.msra.mxu0 0
        %537 = vmatprep.subr.bf16.mxu0 0
        %538 = vmatpush1.bf16.msra.mxu0 0
        %539 = vmatprep.subr.bf16.mxu0 0
        %540 = vmatpush1.bf16.msra.mxu0 0
        %541 = vmatprep.subr.bf16.mxu0 0
        %542 = vmatpush1.bf16.msra.mxu0 0
        %543 = vmatprep.subr.bf16.mxu0 0
        %544 = vmatpush1.bf16.msra.mxu0 0
        %545 = vmatprep.mubr.bf16.mxu0 0
        %546 = vmatmul.mubr.bf16.gmra.mrb[0].mxu0 %v511
        %v547 = vpop.f32.mrb[0].mxu0
        %v548 = vadd.f32 0.0, %v547
        %v549 = vpop.f32.mrb[0].mxu0
        %v550 = vpop.f32.mrb[0].mxu0
        %v551 = vpop.f32.mrb[0].mxu0
        %552 = vdwg.mxu0
        %v554 = vsel %vm457, %v509, 0
        %556 = vmatprep.subr.bf16.mxu0 0
        %557 = vmatpush1.bf16.msra.mxu0 %v407
        %558 = vmatprep.subr.bf16.mxu0 0
        %559 = vmatpush1.bf16.msra.mxu0 0
        %560 = vmatprep.subr.bf16.mxu0 0
        %561 = vmatpush1.bf16.msra.mxu0 0
        %562 = vmatprep.subr.bf16.mxu0 0
        %563 = vmatpush1.bf16.msra.mxu0 0
        %564 = vmatprep.subr.bf16.mxu0 0
        %565 = vmatpush1.bf16.msra.mxu0 0
        %566 = vmatprep.subr.bf16.mxu0 0
        %567 = vmatpush1.bf16.msra.mxu0 0
        %568 = vmatprep.subr.bf16.mxu0 0
        %569 = vmatpush1.bf16.msra.mxu0 0
        %570 = vmatprep.subr.bf16.mxu0 0
        %571 = vmatpush1.bf16.msra.mxu0 0
        %572 = vmatprep.subr.bf16.mxu0 0
        %573 = vmatpush1.bf16.msra.mxu0 0
        %574 = vmatprep.subr.bf16.mxu0 0
        %575 = vmatpush1.bf16.msra.mxu0 0
        %576 = vmatprep.subr.bf16.mxu0 0
        %577 = vmatpush1.bf16.msra.mxu0 0
        %578 = vmatprep.subr.bf16.mxu0 0
        %579 = vmatpush1.bf16.msra.mxu0 0
        %580 = vmatprep.subr.bf16.mxu0 0
        %581 = vmatpush1.bf16.msra.mxu0 0
        %582 = vmatprep.subr.bf16.mxu0 0
        %583 = vmatpush1.bf16.msra.mxu0 0
        %584 = vmatprep.subr.bf16.mxu0 0
        %585 = vmatpush1.bf16.msra.mxu0 0
        %586 = vmatprep.subr.bf16.mxu0 0
        %587 = vmatpush1.bf16.msra.mxu0 0
        %588 = vmatprep.mubr.bf16.mxu0 0
        %589 = vmatmul.mubr.bf16.gmra.mrb[0].mxu0 %v554
        %v590 = vpop.f32.mrb[0].mxu0
        %v591 = vadd.f32 0.0, %v590
        %v592 = vpop.f32.mrb[0].mxu0
        %v593 = vpop.f32.mrb[0].mxu0
        %v594 = vpop.f32.mrb[0].mxu0
        %595 = vdwg.mxu0
        %v596 = vmul.f32 %v548, %v548
        %v597 = vmul.f32 %v591, %v591
        %598 = vadd.xlane.f32.xlu0 %v596
        %v599 = vpop.xlane.xlu0 %598
        %600 = vadd.xlane.f32.xlu0 %v597
        %v601 = vpop.xlane.xlu0 %600
        %v602 = vrsqrt.pop %v599
        %v603 = vmul.f32 %v599, %v602
        %vm604 = vcmp.eq.f32.partialorder %v599, inf
        %v605 = vsel %vm604, %v599, %v603
        %vm606 = vcmp.eq.f32.partialorder %v599, 0.0
        %v607 = vand.u32 %v599, 2147483648
        %v608 = vsel %vm606, %v607, %v605
        %v609 = vrsqrt.pop %v601
        %v610 = vmul.f32 %v601, %v609
        %vm611 = vcmp.eq.f32.partialorder %v601, inf
        %v612 = vsel %vm611, %v601, %v610
        %vm613 = vcmp.eq.f32.partialorder %v601, 0.0
        %v614 = vand.u32 %v601, 2147483648
        %v615 = vsel %vm613, %v614, %v612
        %v616 = vadd.f32 %v608, 1e-08
        %v617 = vadd.f32 %v615, 1e-08
        %v618 = vrcp.pop %v616
        %v619 = vrcp.pop %v617
        %v620 = vmul.f32 %v548, %v618
        %v621 = vmul.f32 %v591, %v619
        %v622 = vsub.f32 %v343, %v620
        %v623 = vsub.f32 %v344, %v621
        %v624 = vmul.f32 %v622, %v622
        %v625 = vmul.f32 %v623, %v623
        %v626 = vpack.c.bf16 %v624, %v624
        %v627 = vpack.c.bf16 %v625, %v625
        %v628 = vld [vmem:[#allocation8] sm:$0xf]
        %v629 = vld [vmem:[#allocation8 + $0x4] sm:$0xf]
        %v630 = vld [vmem:[#allocation8 + $0x8] sm:$0xf]
        %v631 = vld [vmem:[#allocation8 + $0xc] sm:$0xf]
        %v632 = vld [vmem:[#allocation8 + $0x10] sm:$0xf]
        %v633 = vld [vmem:[#allocation8 + $0x14] sm:$0xf]
        %v634 = vld [vmem:[#allocation8 + $0x18] sm:$0xf]
        %v635 = vld [vmem:[#allocation8 + $0x1c] sm:$0xf]
        %v636 = vld [vmem:[#allocation8 + $0x20] sm:$0xf]
        %v637 = vld [vmem:[#allocation8 + $0x24] sm:$0xf]
        %v638 = vld [vmem:[#allocation8 + $0x28] sm:$0xf]
        %v639 = vld [vmem:[#allocation8 + $0x2c] sm:$0xf]
        %v640 = vld [vmem:[#allocation8 + $0x30] sm:$0xf]
        %v641 = vld [vmem:[#allocation8 + $0x34] sm:$0xf]
        %v642 = vld [vmem:[#allocation8 + $0x38] sm:$0xf]
        %v643 = vld [vmem:[#allocation8 + $0x3c] sm:$0xf]
        %v646 = vunpack.c.l.b16 %v626
        %v647 = vunpack.c.l.b16 %v627
        %v648 = vpack.c.b16 %v647, %v646
        %v666 = vunpack.c.l.b16 %v628
        %v667 = vunpack.c.l.b16 %v629
        %v668 = vunpack.c.l.b16 %v630
        %v669 = vunpack.c.l.b16 %v631
        %v670 = vunpack.c.l.b16 %v632
        %v671 = vunpack.c.l.b16 %v633
        %v672 = vunpack.c.l.b16 %v634
        %v673 = vunpack.c.l.b16 %v635
        %v674 = vunpack.c.l.b16 %v636
        %v675 = vunpack.c.l.b16 %v637
        %v676 = vunpack.c.l.b16 %v638
        %v677 = vunpack.c.l.b16 %v639
        %v678 = vunpack.c.l.b16 %v640
        %v679 = vunpack.c.l.b16 %v641
        %v680 = vunpack.c.l.b16 %v642
        %v681 = vunpack.c.l.b16 %v643
        %v682 = vpack.c.b16 %v667, %v666
        %v683 = vpack.c.b16 %v669, %v668
        %v684 = vpack.c.b16 %v671, %v670
        %v685 = vpack.c.b16 %v673, %v672
        %v686 = vpack.c.b16 %v675, %v674
        %v687 = vpack.c.b16 %v677, %v676
        %v688 = vpack.c.b16 %v679, %v678
        %v689 = vpack.c.b16 %v681, %v680
        %698 = vmatprep.subr.bf16.mxu0 0
        %699 = vmatpush1.bf16.msra.mxu0 %v682
        %700 = vmatprep.subr.bf16.mxu0 0
        %701 = vmatpush1.bf16.msra.mxu0 %v683
        %702 = vmatprep.subr.bf16.mxu0 0
        %703 = vmatpush1.bf16.msra.mxu0 %v684
        %704 = vmatprep.subr.bf16.mxu0 0
        %705 = vmatpush1.bf16.msra.mxu0 %v685
        %706 = vmatprep.subr.bf16.mxu0 0
        %707 = vmatpush1.bf16.msra.mxu0 %v686
        %708 = vmatprep.subr.bf16.mxu0 0
        %709 = vmatpush1.bf16.msra.mxu0 %v687
        %710 = vmatprep.subr.bf16.mxu0 0
        %711 = vmatpush1.bf16.msra.mxu0 %v688
        %712 = vmatprep.subr.bf16.mxu0 0
        %713 = vmatpush1.bf16.msra.mxu0 %v689
        %714 = vmatprep.subr.bf16.mxu0 0
        %715 = vmatpush1.bf16.msra.mxu0 0
        %716 = vmatprep.subr.bf16.mxu0 0
        %717 = vmatpush1.bf16.msra.mxu0 0
        %718 = vmatprep.subr.bf16.mxu0 0
        %719 = vmatpush1.bf16.msra.mxu0 0
        %720 = vmatprep.subr.bf16.mxu0 0
        %721 = vmatpush1.bf16.msra.mxu0 0
        %722 = vmatprep.subr.bf16.mxu0 0
        %723 = vmatpush1.bf16.msra.mxu0 0
        %724 = vmatprep.subr.bf16.mxu0 0
        %725 = vmatpush1.bf16.msra.mxu0 0
        %726 = vmatprep.subr.bf16.mxu0 0
        %727 = vmatpush1.bf16.msra.mxu0 0
        %728 = vmatprep.subr.bf16.mxu0 0
        %729 = vmatpush1.bf16.msra.mxu0 0
        %730 = vmatprep.mubr.bf16.mxu0 0
        %731 = vmatmul.mubr.bf16.gmra.mrb[0].mxu0 %v648
        %v732 = vpop.f32.mrb[0].mxu0
        %v733 = vadd.f32 0.0, %v732
        %v734 = vpop.f32.mrb[0].mxu0
        %v735 = vpop.f32.mrb[0].mxu0
        %v736 = vadd.f32 0.0, %v735
        %v737 = vpop.f32.mrb[0].mxu0
        %738 = vdwg.mxu0
        %v739 = vld [vmem:[%s4] sm:$0x1]
        %v741 = vlaneseq
        %v742 = vshrl.u32 %v741, 7
        %v743 = vsub.s32 0, %v742
        %v744 = vrot.slane %v739, %v743
        %v746 = vadd.f32 %v733, %v744
        %v747 = vadd.f32 %v736, %v744
        %v748 = vmul.f32 %v746, %v746
        %v749 = vmul.f32 %v747, %v747
        %750 = vadd.xlane.f32.xlu0 %v748
        %v751 = vpop.xlane.xlu0 %750
        %752 = vadd.xlane.f32.xlu0 %v749
        %v753 = vpop.xlane.xlu0 %752
        %v754 = vrsqrt.pop %v751
        %v755 = vmul.f32 %v751, %v754
        %vm756 = vcmp.eq.f32.partialorder %v751, inf
        %v757 = vsel %vm756, %v751, %v755
        %vm758 = vcmp.eq.f32.partialorder %v751, 0.0
        %v759 = vand.u32 %v751, 2147483648
        %v760 = vsel %vm758, %v759, %v757
        %v761 = vrsqrt.pop %v753
        %v762 = vmul.f32 %v753, %v761
        %vm763 = vcmp.eq.f32.partialorder %v753, inf
        %v764 = vsel %vm763, %v753, %v762
        %vm765 = vcmp.eq.f32.partialorder %v753, 0.0
        %v766 = vand.u32 %v753, 2147483648
        %v767 = vsel %vm765, %v766, %v764
        %v768 = vadd.f32 %v760, 1e-08
        %v769 = vadd.f32 %v767, 1e-08
        %v770 = vrcp.pop %v768
        %v771 = vrcp.pop %v769
        %v772 = vmul.f32 %v746, %v770
        %v773 = vmul.f32 %v747, %v771
        %774 = vst [vmem:[%s335] sm:$0xff] %v772
        %775 = vst [vmem:[%s335 + $0x8] sm:$0xff] %v773
        %s776 = sand.u32 %s154, 1
        %s777 = scalar_lea.sflag [#allocation4], %s776
        %s778 = sand.u32 %s154, 1
        %s779 = smul.addr %s778, 16
        %s780 = scalar_lea.vmem [#allocation10], %s779
        // Predicated region
        $region57: #{tpu_custom_call.1} parent=39 // pred_check
          %p781 = pneg %p164
        $region58: #{tpu_custom_call.1} parent=39 // pred_check_branch
          %783 = sbr.rel (%p781) target = $region60
        $region59: #{tpu_custom_call.1} parent=39 // pred_region
          %s784 = smul.u32 2, %s26
          %s786 = ssub.s32 256, 256
          %787 = vsyncadd %s777, %s786
          %s788 = smul.addr %s784, 128
          %s789 = scalar_lea.hbm %s5, %s788
          %s790 = sshll.u32 %s780, 4
          %s791 = int_to_ptr.vmem [resolvable:$true] %s790
          %796 = dma.vmem_to_hbm [thread:$0]  %s791, 256, %s789, %s777, 128, 128, 8
        $region60: #{tpu_custom_call.1} parent=39 // pred_fallthru
          _
      $region40: #{tpu_custom_call.1} parent=5 // pred_fallthru
        _
      %p797 = scmp.le.s32.totalorder 2, %s21
      // Predicated region
      $region61: #{tpu_custom_call.1} parent=5 // pred_check
        %p798 = pneg %p797
      $region62: #{tpu_custom_call.1} parent=5 // pred_check_branch
        %800 = sbr.rel (%p798) target = $region64
      $region63: #{tpu_custom_call.1} parent=5 // pred_region
        %s801 = ssub.s32 %s21, 2
        // Predicated region
        $region65: #{tpu_custom_call.1} parent=63 // pred_check
          %p802 = pneg %p170
        $region66: #{tpu_custom_call.1} parent=63 // pred_check_branch
          %804 = sbr.rel (%p802) target = $region68
        $region67: #{tpu_custom_call.1} parent=63 // pred_region
          %s805 = sand.u32 %s155, 1
          %s806 = scalar_lea.sflag [#allocation4], %s805
          %s807 = sand.u32 %s155, 1
          %s808 = smul.addr %s807, 16
          %s809 = scalar_lea.vmem [#allocation10], %s808
          %810 = dma.done %s806, 256
        $region68: #{tpu_custom_call.1} parent=63 // pred_fallthru
          _
      $region64: #{tpu_custom_call.1} parent=5 // pred_fallthru
        _
    $region6: #{tpu_custom_call.1} parent=1 // loop_footer
      %s25 = sadd.s32 1, %s21
    $region7: #{tpu_custom_call.1} parent=1 // loop_footer_branch
      %20 = sbr.rel target = $region3
    $region8: #{tpu_custom_call.1} parent=1 // loop_exit
      _
    %811 = vsyncpa [#allocation3], 1
    %s812 = scalar_lea.sflag [#allocation3], 1
    %813 = vsyncpa %s812, 1
    %814 = vsyncpa [#allocation6], 1
    %s815 = scalar_lea.sflag [#allocation6], 1
    %816 = vsyncpa %s815, 1
    %817 = vsyncpa [#allocation9], 1
    %818 = vsyncpa [#allocation4], 1
    %s819 = scalar_lea.sflag [#allocation4], 1
    %820 = vsyncpa %s819, 1

</llo_original>
